<compile_context>
chip_gen: v6e
topology: v6e:2x2x1
jax: 0.10.0
libtpu: 0.0.40
codegen_flags: <defaults>
</compile_context>

<pallas_src>
import functools

import jax
import jax.numpy as jnp
from jax.experimental import pallas as pl
from jax.experimental.pallas import tpu as pltpu

IN_DIM = 784
HID = 200
OUT_DIM = 10

HID_PAD = 256       # 200 -> 256 (two full lane groups)
OUT_PAD = 128       # 10 -> 128  (lane-dense output stores, no vst.msk)
MAX_TILE_B = 1024   # batch tile cap (v6e HBM-roofline sweet spot)
NEG_BIG = -1.0e30   # finite "minus infinity" baked into b3 pad lanes


def _round_up(x, m):
    return (x + m - 1) // m * m


def _mlp_logsoftmax_kernel(x_ref, w1_ref, b1_ref, w2_ref, b2_ref,
                           w3_ref, b3_ref, o_ref):
    # x tile arrives as raw f32 pixels; cast to bf16 here (VPU cast hides
    # under the MXU) instead of in a separate wrapper-side XLA pass.
    x = x_ref[...].astype(jnp.bfloat16)

    # fc1 + ReLU  (MXU in bf16, f32 accumulation, elementwise in f32)
    h1 = jnp.dot(x, w1_ref[...], preferred_element_type=jnp.float32)
    h1 = jnp.maximum(h1 + b1_ref[...], 0.0)
    # TODO(synk): F.dropout / nn.Dropout2d are identity in eval mode;
    # training-mode stochastic masking is intentionally not implemented.

    # fc2 + ReLU
    h2 = jnp.dot(h1.astype(jnp.bfloat16), w2_ref[...],
                 preferred_element_type=jnp.float32)
    h2 = jnp.maximum(h2 + b2_ref[...], 0.0)

    # fc3 -> padded logits (TILE_B, 128).  w3 pad columns are zero and b3 pad
    # lanes carry -1e30, so pad logits are a large finite negative: no extra
    # iota/where masking is needed before the log-softmax.
    logits = jnp.dot(h2.astype(jnp.bfloat16), w3_ref[...],
                     preferred_element_type=jnp.float32)
    logits = logits + b3_ref[...]

    # Numerically stable log_softmax along dim=1.
    m = jnp.max(logits, axis=-1, keepdims=True)
    shifted = logits - m
    lse = jnp.log(jnp.sum(jnp.exp(shifted), axis=-1, keepdims=True))
    o_ref[...] = (shifted - lse).astype(o_ref.dtype)


def _pad_and_cast_params(params):
    """Zero-pad to (784,256)/(256,256)/(256,128); weights bf16, biases f32.
    b3 pad lanes are set to -1e30 so padded logits never win the softmax."""
    w1, b1, w2, b2, w3, b3 = params
    w1p = jnp.zeros((IN_DIM, HID_PAD), jnp.float32).at[:, :HID].set(w1)
    b1p = jnp.zeros((1, HID_PAD), jnp.float32).at[:, :HID].set(b1)
    w2p = jnp.zeros((HID_PAD, HID_PAD), jnp.float32).at[:HID, :HID].set(w2)
    b2p = jnp.zeros((1, HID_PAD), jnp.float32).at[:, :HID].set(b2)
    w3p = jnp.zeros((HID_PAD, OUT_PAD), jnp.float32).at[:HID, :OUT_DIM].set(w3)
    b3p = jnp.full((1, OUT_PAD), NEG_BIG, jnp.float32).at[:, :OUT_DIM].set(b3)
    return (w1p.astype(jnp.bfloat16), b1p,
            w2p.astype(jnp.bfloat16), b2p,
            w3p.astype(jnp.bfloat16), b3p)


def _batch_tiling(B):
    """tile_b / num_tiles with <= 8 rows of padding beyond alignment, and an
    even number (>=2) of tiles for B >= 128 so v7x's 2 TCs both get work."""
    b8 = _round_up(max(B, 1), 8)
    num_tiles = pl.cdiv(b8, MAX_TILE_B)
    if b8 >= 128:
        num_tiles = _round_up(max(num_tiles, 2), 2)
    tile_b = _round_up(pl.cdiv(b8, num_tiles), 8)
    return tile_b, num_tiles, num_tiles * tile_b


@functools.partial(jax.jit, static_argnames=())
def model_d_forward(x_nchw, params):
    """x_nchw: (B, 1, 28, 28) float32.  Returns log-probs (B, 10) float32."""
    w1, b1, w2, b2, w3, b3 = _pad_and_cast_params(params)

    B = x_nchw.shape[0]
    x = x_nchw.reshape(B, -1)                     # (B, 784) f32 — no cast here

    tile_b, num_tiles, b_pad = _batch_tiling(B)
    if b_pad != B:
        x = jnp.pad(x, ((0, b_pad - B), (0, 0)))

    # Single VMEM estimate (double buffers counted once) + one 1.5x margin,
    # floored at the 32 MiB scoped default and capped at 48 MiB (v7x-safe).
    w_bytes = (IN_DIM * HID_PAD + HID_PAD * HID_PAD + HID_PAD * OUT_PAD) * 2
    bias_bytes = (2 * HID_PAD + OUT_PAD) * 4
    vmem_need = (
        2 * tile_b * IN_DIM * 4                   # double-buffered f32 x tile
        + 2 * tile_b * OUT_PAD * 2                # double-buffered bf16 out tile
        + 2 * (w_bytes + bias_bytes)              # resident weights/biases (x2 bufs)
        + tile_b * (IN_DIM * 2 + 12 * HID_PAD + 4 * OUT_PAD)  # in-kernel temps
    )
    vmem_limit = int(min(48 << 20, max(32 << 20, vmem_need + vmem_need // 2)))

    out_padded = pl.pallas_call(
        _mlp_logsoftmax_kernel,
        out_shape=jax.ShapeDtypeStruct((b_pad, OUT_PAD), jnp.bfloat16),
        grid=(num_tiles,),
        in_specs=[
            pl.BlockSpec((tile_b, IN_DIM), lambda i: (i, 0)),     # x tile (f32)
            pl.BlockSpec((IN_DIM, HID_PAD), lambda i: (0, 0)),    # w1 (resident)
            pl.BlockSpec((1, HID_PAD), lambda i: (0, 0)),         # b1
            pl.BlockSpec((HID_PAD, HID_PAD), lambda i: (0, 0)),   # w2
            pl.BlockSpec((1, HID_PAD), lambda i: (0, 0)),         # b2
            pl.BlockSpec((HID_PAD, OUT_PAD), lambda i: (0, 0)),   # w3
            pl.BlockSpec((1, OUT_PAD), lambda i: (0, 0)),         # b3 (masked pads)
        ],
        out_specs=pl.BlockSpec((tile_b, OUT_PAD), lambda i: (i, 0)),
        compiler_params=pltpu.CompilerParams(
            dimension_semantics=("parallel",),
            vmem_limit_bytes=vmem_limit,
        ),
    )(x, w1, b1, w2, b2, w3, b3)

    # Layout plumbing: drop batch padding + pad lanes, restore f32 output.
    return out_padded[:B, :OUT_DIM].astype(jnp.float32)


def init_params(key):
    """Deterministic synthetic params with the nn.Linear shapes (stored
    transposed as (in, out) for the kernel)."""
    k1, k2, k3, k4, k5, k6 = jax.random.split(key, 6)

    def lin(kw, kb, fan_in, fan_out):
        # Kaiming-uniform-ish bound like PyTorch's default Linear init.
        bound = 1.0 / jnp.sqrt(fan_in)
        w = jax.random.uniform(kw, (fan_in, fan_out), jnp.float32, -bound, bound)
        b = jax.random.uniform(kb, (1, fan_out), jnp.float32, -bound, bound)
        return w, b

    w1, b1 = lin(k1, k2, IN_DIM, HID)
    w2, b2 = lin(k3, k4, HID, HID)
    w3, b3 = lin(k5, k6, HID, OUT_DIM)
    return (w1, b1, w2, b2, w3, b3)


if __name__ == "__main__":
    key = jax.random.PRNGKey(0)
    kx, kp = jax.random.split(key)

    B = 2
    x = jax.random.normal(kx, (B, 1, 28, 28), jnp.float32)     # NCHW, like MNIST
    params = init_params(kp)

    out = model_d_forward(x, params)
    out = jax.block_until_ready(out)

    # Sanity: log-softmax rows should sum (in prob space) to ~1
    # (bf16 kernel output -> a looser tolerance than a pure-f32 path).
    row_sums = jnp.sum(jnp.exp(out), axis=1)
    assert out.shape == (B, 10)
    assert bool(jnp.all(jnp.abs(row_sums - 1.0) < 2e-2))
    assert bool(jnp.all(jnp.isfinite(out)))

    # Cross-check against a plain-JAX f32 reference (bf16 MXU / bf16 output
    # tolerance).
    w1, b1, w2, b2, w3, b3 = params
    xf = x.reshape(B, -1)
    h1 = jnp.maximum(xf @ w1 + b1, 0.0)
    h2 = jnp.maximum(h1 @ w2 + b2, 0.0)
    lg = h2 @ w3 + b3
    ref = lg - jax.scipy.special.logsumexp(lg, axis=1, keepdims=True)
    assert bool(jnp.all(jnp.abs(out - ref) < 6e-2))

    print("KERNEL_OK")
</pallas_src>

<mosaic_0001>
module attributes {stable_mosaic.version = 11 : i64} {
  func.func @_mlp_logsoftmax_kernel(%arg0: i32, %arg1: memref<8x784xf32, #tpu.memory_space<vmem>>, %arg2: memref<784x256xbf16, #tpu.memory_space<vmem>>, %arg3: memref<1x256xf32, #tpu.memory_space<vmem>>, %arg4: memref<256x256xbf16, #tpu.memory_space<vmem>>, %arg5: memref<1x256xf32, #tpu.memory_space<vmem>>, %arg6: memref<256x128xbf16, #tpu.memory_space<vmem>>, %arg7: memref<1x128xf32, #tpu.memory_space<vmem>>, %arg8: memref<8x128xbf16, #tpu.memory_space<vmem>>) attributes {dimension_semantics = [#tpu.dimension_semantics<parallel>], iteration_bounds = array<i64: 1>, scalar_prefetch = 0 : i64, scratch_operands = 0 : i64, tpu.core_type = #tpu.core_type<tc>, window_params = [{transform_indices = @transform_0, window_bounds = array<i64: 8, 784>}, {pipeline_mode = #tpu.pipeline_mode<synchronous>, transform_indices = @transform_1, window_bounds = array<i64: 784, 256>}, {pipeline_mode = #tpu.pipeline_mode<synchronous>, transform_indices = @transform_2, window_bounds = array<i64: 1, 256>}, {pipeline_mode = #tpu.pipeline_mode<synchronous>, transform_indices = @transform_3, window_bounds = array<i64: 256, 256>}, {pipeline_mode = #tpu.pipeline_mode<synchronous>, transform_indices = @transform_4, window_bounds = array<i64: 1, 256>}, {pipeline_mode = #tpu.pipeline_mode<synchronous>, transform_indices = @transform_5, window_bounds = array<i64: 256, 128>}, {pipeline_mode = #tpu.pipeline_mode<synchronous>, transform_indices = @transform_6, window_bounds = array<i64: 1, 128>}, {transform_indices = @transform_7, window_bounds = array<i64: 8, 128>}]} {
    %c0 = arith.constant 0 : index
    %c0_0 = arith.constant 0 : index
    %0 = vector.load %arg1[%c0, %c0_0] : memref<8x784xf32, #tpu.memory_space<vmem>>, vector<8x784xf32>
    %1 = arith.truncf %0 : vector<8x784xf32> to vector<8x784xbf16>
    %c0_1 = arith.constant 0 : index
    %c0_2 = arith.constant 0 : index
    %2 = vector.load %arg2[%c0_1, %c0_2] : memref<784x256xbf16, #tpu.memory_space<vmem>>, vector<784x256xbf16>
    %cst = arith.constant dense<0.000000e+00> : vector<8x256xf32>
    %3 = tpu.matmul %1, %2, %cst {dimension_numbers = #tpu.dot_dimension_numbers<[1], [0], [0], [1], [0, 0, 1, 1], [], []>} : vector<8x784xbf16>, vector<784x256xbf16>, vector<8x256xf32> -> vector<8x256xf32>
    %c0_3 = arith.constant 0 : index
    %c0_4 = arith.constant 0 : index
    %4 = vector.load %arg3[%c0_3, %c0_4] : memref<1x256xf32, #tpu.memory_space<vmem>>, vector<1x256xf32>
    %5 = vector.broadcast %4 : vector<1x256xf32> to vector<8x256xf32>
    %6 = arith.addf %3, %5 : vector<8x256xf32>
    %cst_5 = arith.constant 0.000000e+00 : f32
    %7 = vector.broadcast %cst_5 : f32 to vector<8x256xf32>
    %8 = arith.maximumf %6, %7 : vector<8x256xf32>
    %9 = arith.truncf %8 : vector<8x256xf32> to vector<8x256xbf16>
    %c0_6 = arith.constant 0 : index
    %c0_7 = arith.constant 0 : index
    %10 = vector.load %arg4[%c0_6, %c0_7] : memref<256x256xbf16, #tpu.memory_space<vmem>>, vector<256x256xbf16>
    %cst_8 = arith.constant dense<0.000000e+00> : vector<8x256xf32>
    %11 = tpu.matmul %9, %10, %cst_8 {dimension_numbers = #tpu.dot_dimension_numbers<[1], [0], [0], [1], [0, 0, 1, 1], [], []>} : vector<8x256xbf16>, vector<256x256xbf16>, vector<8x256xf32> -> vector<8x256xf32>
    %c0_9 = arith.constant 0 : index
    %c0_10 = arith.constant 0 : index
    %12 = vector.load %arg5[%c0_9, %c0_10] : memref<1x256xf32, #tpu.memory_space<vmem>>, vector<1x256xf32>
    %13 = vector.broadcast %12 : vector<1x256xf32> to vector<8x256xf32>
    %14 = arith.addf %11, %13 : vector<8x256xf32>
    %cst_11 = arith.constant 0.000000e+00 : f32
    %15 = vector.broadcast %cst_11 : f32 to vector<8x256xf32>
    %16 = arith.maximumf %14, %15 : vector<8x256xf32>
    %17 = arith.truncf %16 : vector<8x256xf32> to vector<8x256xbf16>
    %c0_12 = arith.constant 0 : index
    %c0_13 = arith.constant 0 : index
    %18 = vector.load %arg6[%c0_12, %c0_13] : memref<256x128xbf16, #tpu.memory_space<vmem>>, vector<256x128xbf16>
    %cst_14 = arith.constant dense<0.000000e+00> : vector<8x128xf32>
    %19 = tpu.matmul %17, %18, %cst_14 {dimension_numbers = #tpu.dot_dimension_numbers<[1], [0], [0], [1], [0, 0, 1, 1], [], []>} : vector<8x256xbf16>, vector<256x128xbf16>, vector<8x128xf32> -> vector<8x128xf32>
    %c0_15 = arith.constant 0 : index
    %c0_16 = arith.constant 0 : index
    %20 = vector.load %arg7[%c0_15, %c0_16] : memref<1x128xf32, #tpu.memory_space<vmem>>, vector<1x128xf32>
    %21 = vector.broadcast %20 : vector<1x128xf32> to vector<8x128xf32>
    %22 = arith.addf %19, %21 : vector<8x128xf32>
    %cst_17 = arith.constant dense<0xFF800000> : vector<8xf32>
    %23 = vector.multi_reduction <maximumf>, %22, %cst_17 [1] : vector<8x128xf32> to vector<8xf32>
    %24 = vector.shape_cast %23 : vector<8xf32> to vector<8x1xf32>
    %25 = vector.broadcast %24 : vector<8x1xf32> to vector<8x128xf32>
    %26 = arith.subf %22, %25 : vector<8x128xf32>
    %27 = math.exp %26 : vector<8x128xf32>
    %cst_18 = arith.constant dense<0.000000e+00> : vector<8xf32>
    %28 = vector.multi_reduction <add>, %27, %cst_18 [1] : vector<8x128xf32> to vector<8xf32>
    %29 = vector.shape_cast %28 : vector<8xf32> to vector<8x1xf32>
    %30 = math.log %29 : vector<8x1xf32>
    %31 = vector.broadcast %30 : vector<8x1xf32> to vector<8x128xf32>
    %32 = arith.subf %26, %31 : vector<8x128xf32>
    %33 = arith.truncf %32 : vector<8x128xf32> to vector<8x128xbf16>
    %c0_19 = arith.constant 0 : index
    %c0_20 = arith.constant 0 : index
    %34 = vector.load %arg8[%c0_19, %c0_20] : memref<8x128xbf16, #tpu.memory_space<vmem>>, vector<8x128xbf16>
    tpu.vector_store %arg8[%c0_19, %c0_20], %33 {strides = array<i32>} : memref<8x128xbf16, #tpu.memory_space<vmem>>, vector<8x128xbf16>,
    return
  }
  func.func @transform_0(%arg0: i32) -> (i32, i32) {
    %c0_i32 = arith.constant 0 : i32
    %c0_i32_0 = arith.constant 0 : i32
    return %arg0, %c0_i32 : i32, i32
  }
  func.func @transform_1(%arg0: i32) -> (i32, i32) {
    %c0_i32 = arith.constant 0 : i32
    %c0_i32_0 = arith.constant 0 : i32
    %c0_i32_1 = arith.constant 0 : i32
    return %c0_i32, %c0_i32_0 : i32, i32
  }
  func.func @transform_2(%arg0: i32) -> (i32, i32) {
    %c0_i32 = arith.constant 0 : i32
    %c0_i32_0 = arith.constant 0 : i32
    %c0_i32_1 = arith.constant 0 : i32
    return %c0_i32, %c0_i32_0 : i32, i32
  }
  func.func @transform_3(%arg0: i32) -> (i32, i32) {
    %c0_i32 = arith.constant 0 : i32
    %c0_i32_0 = arith.constant 0 : i32
    %c0_i32_1 = arith.constant 0 : i32
    return %c0_i32, %c0_i32_0 : i32, i32
  }
  func.func @transform_4(%arg0: i32) -> (i32, i32) {
    %c0_i32 = arith.constant 0 : i32
    %c0_i32_0 = arith.constant 0 : i32
    %c0_i32_1 = arith.constant 0 : i32
    return %c0_i32, %c0_i32_0 : i32, i32
  }
  func.func @transform_5(%arg0: i32) -> (i32, i32) {
    %c0_i32 = arith.constant 0 : i32
    %c0_i32_0 = arith.constant 0 : i32
    %c0_i32_1 = arith.constant 0 : i32
    return %c0_i32, %c0_i32_0 : i32, i32
  }
  func.func @transform_6(%arg0: i32) -> (i32, i32) {
    %c0_i32 = arith.constant 0 : i32
    %c0_i32_0 = arith.constant 0 : i32
    %c0_i32_1 = arith.constant 0 : i32
    return %c0_i32, %c0_i32_0 : i32, i32
  }
  func.func @transform_7(%arg0: i32) -> (i32, i32) {
    %c0_i32 = arith.constant 0 : i32
    %c0_i32_0 = arith.constant 0 : i32
    return %arg0, %c0_i32 : i32, i32
  }
}

</mosaic_0001>

<llo_original>
// kernel: model_d_forward.1
$region0: #{model_d_forward.1}
  #allocation0 [shape = 'u32[]', space=smem, size = 0x4, offset = 0x4, fixed_abs, tag = 'smem constant byte address 0x4 - core index']
  #allocation1 [shape = 'u32[144,128]{1,0:T(1,128)}', space=vmem, size = 0x12000, scoped, tag = 'internal scratch']
  %s0 = inlined_call_operand.vmem [shape: f32[8,784], index: 0, kind: input, shape index: {}]
  %s1 = inlined_call_operand.vmem [shape: bf16[784,256], index: 1, kind: input, shape index: {}]
  %s2 = inlined_call_operand.vmem [shape: f32[1,256], index: 2, kind: input, shape index: {}]
  %s3 = inlined_call_operand.vmem [shape: bf16[256,256], index: 3, kind: input, shape index: {}]
  %s4 = inlined_call_operand.vmem [shape: f32[1,256], index: 4, kind: input, shape index: {}]
  %s5 = inlined_call_operand.vmem [shape: bf16[256,128], index: 5, kind: input, shape index: {}]
  %s6 = inlined_call_operand.vmem [shape: f32[1,128], index: 6, kind: input, shape index: {}]
  %s7 = inlined_call_operand.vmem [shape: bf16[8,128], index: 7, kind: output, shape index: {}]
  %s8 = sld [smem:[#allocation0]]
  $region38: #{model_d_forward.1} parent=0
    _
  %s10 = ssub.s32 1, %s8
  %s11 = scalar_select 0, %s10, %s8
  // Predicated region
  $region2: #{model_d_forward.1} parent=0 // pred_check
    _
  $region3: #{model_d_forward.1} parent=0 // pred_check_branch
    %13 = sbr.rel (0) target = $region5
  $region4: #{model_d_forward.1} parent=0 // pred_region
    _
  $region5: #{model_d_forward.1} parent=0 // pred_fallthru
    _
  // Predicated region
  $region6: #{model_d_forward.1} parent=0 // pred_check
    _
  $region7: #{model_d_forward.1} parent=0 // pred_check_branch
    %15 = sbr.rel (0) target = $region9
  $region8: #{model_d_forward.1} parent=0 // pred_region
    _
  $region9: #{model_d_forward.1} parent=0 // pred_fallthru
    _
  // Predicated region
  $region10: #{model_d_forward.1} parent=0 // pred_check
    _
  $region11: #{model_d_forward.1} parent=0 // pred_check_branch
    %17 = sbr.rel (0) target = $region13
  $region12: #{model_d_forward.1} parent=0 // pred_region
    _
  $region13: #{model_d_forward.1} parent=0 // pred_fallthru
    _
  // Predicated region
  $region14: #{model_d_forward.1} parent=0 // pred_check
    _
  $region15: #{model_d_forward.1} parent=0 // pred_check_branch
    %19 = sbr.rel (0) target = $region17
  $region16: #{model_d_forward.1} parent=0 // pred_region
    _
  $region17: #{model_d_forward.1} parent=0 // pred_fallthru
    _
  // Predicated region
  $region18: #{model_d_forward.1} parent=0 // pred_check
    _
  $region19: #{model_d_forward.1} parent=0 // pred_check_branch
    %21 = sbr.rel (0) target = $region21
  $region20: #{model_d_forward.1} parent=0 // pred_region
    _
  $region21: #{model_d_forward.1} parent=0 // pred_fallthru
    _
  // Predicated region
  $region22: #{model_d_forward.1} parent=0 // pred_check
    _
  $region23: #{model_d_forward.1} parent=0 // pred_check_branch
    %23 = sbr.rel (0) target = $region25
  $region24: #{model_d_forward.1} parent=0 // pred_region
    _
  $region25: #{model_d_forward.1} parent=0 // pred_fallthru
    _
  // Predicated region
  $region26: #{model_d_forward.1} parent=0 // pred_check
    _
  $region27: #{model_d_forward.1} parent=0 // pred_check_branch
    %25 = sbr.rel (0) target = $region29
  $region28: #{model_d_forward.1} parent=0 // pred_region
    _
  $region29: #{model_d_forward.1} parent=0 // pred_fallthru
    _
  %v27 = vld [vmem:[%s0] sm:$0xff]
  %v28 = vld [vmem:[%s0 + $0x8] sm:$0xff]
  %v29 = vld [vmem:[%s0 + $0x10] sm:$0xff]
  %v30 = vld [vmem:[%s0 + $0x18] sm:$0xff]
  %v31 = vld [vmem:[%s0 + $0x20] sm:$0xff]
  %v32 = vld [vmem:[%s0 + $0x28] sm:$0xff]
  %v33 = vld [vmem:[%s0 + $0x30] sm:$0xff]
  %v34 = vpack.c.bf16 %v27, %v27
  %v35 = vpack.c.bf16 %v28, %v28
  %v36 = vpack.c.bf16 %v29, %v29
  %v37 = vpack.c.bf16 %v30, %v30
  %v38 = vpack.c.bf16 %v31, %v31
  %v39 = vpack.c.bf16 %v32, %v32
  %v40 = vpack.c.bf16 %v33, %v33
  %v41 = vld [vmem:[%s1] sm:$0xff]
  %v42 = vld [vmem:[%s1 + $0x8] sm:$0xff]
  %v43 = vld [vmem:[%s1 + $0x10] sm:$0xff]
  %v44 = vld [vmem:[%s1 + $0x18] sm:$0xff]
  %v45 = vld [vmem:[%s1 + $0x20] sm:$0xff]
  %v46 = vld [vmem:[%s1 + $0x28] sm:$0xff]
  %v47 = vld [vmem:[%s1 + $0x30] sm:$0xff]
  %v48 = vld [vmem:[%s1 + $0x38] sm:$0xff]
  %v49 = vld [vmem:[%s1 + $0x40] sm:$0xff]
  %v50 = vld [vmem:[%s1 + $0x48] sm:$0xff]
  %v51 = vld [vmem:[%s1 + $0x50] sm:$0xff]
  %v52 = vld [vmem:[%s1 + $0x58] sm:$0xff]
  %v53 = vld [vmem:[%s1 + $0x60] sm:$0xff]
  %v54 = vld [vmem:[%s1 + $0x68] sm:$0xff]
  %v55 = vld [vmem:[%s1 + $0x70] sm:$0xff]
  %v56 = vld [vmem:[%s1 + $0x78] sm:$0xff]
  %v57 = vld [vmem:[%s1 + $0x80] sm:$0xff]
  %v58 = vld [vmem:[%s1 + $0x88] sm:$0xff]
  %v59 = vld [vmem:[%s1 + $0x90] sm:$0xff]
  %v60 = vld [vmem:[%s1 + $0x98] sm:$0xff]
  %v61 = vld [vmem:[%s1 + $0xa0] sm:$0xff]
  %v62 = vld [vmem:[%s1 + $0xa8] sm:$0xff]
  %v63 = vld [vmem:[%s1 + $0xb0] sm:$0xff]
  %v64 = vld [vmem:[%s1 + $0xb8] sm:$0xff]
  %v65 = vld [vmem:[%s1 + $0xc0] sm:$0xff]
  %v66 = vld [vmem:[%s1 + $0xc8] sm:$0xff]
  %v67 = vld [vmem:[%s1 + $0xd0] sm:$0xff]
  %v68 = vld [vmem:[%s1 + $0xd8] sm:$0xff]
  %v69 = vld [vmem:[%s1 + $0xe0] sm:$0xff]
  %v70 = vld [vmem:[%s1 + $0xe8] sm:$0xff]
  %v71 = vld [vmem:[%s1 + $0xf0] sm:$0xff]
  %v72 = vld [vmem:[%s1 + $0xf8] sm:$0xff]
  %v73 = vld [vmem:[%s1 + $0x100] sm:$0xff]
  %v74 = vld [vmem:[%s1 + $0x108] sm:$0xff]
  %v75 = vld [vmem:[%s1 + $0x110] sm:$0xff]
  %v76 = vld [vmem:[%s1 + $0x118] sm:$0xff]
  %v77 = vld [vmem:[%s1 + $0x120] sm:$0xff]
  %v78 = vld [vmem:[%s1 + $0x128] sm:$0xff]
  %v79 = vld [vmem:[%s1 + $0x130] sm:$0xff]
  %v80 = vld [vmem:[%s1 + $0x138] sm:$0xff]
  %v81 = vld [vmem:[%s1 + $0x140] sm:$0xff]
  %v82 = vld [vmem:[%s1 + $0x148] sm:$0xff]
  %v83 = vld [vmem:[%s1 + $0x150] sm:$0xff]
  %v84 = vld [vmem:[%s1 + $0x158] sm:$0xff]
  %v85 = vld [vmem:[%s1 + $0x160] sm:$0xff]
  %v86 = vld [vmem:[%s1 + $0x168] sm:$0xff]
  %v87 = vld [vmem:[%s1 + $0x170] sm:$0xff]
  %v88 = vld [vmem:[%s1 + $0x178] sm:$0xff]
  %v89 = vld [vmem:[%s1 + $0x180] sm:$0xff]
  %v90 = vld [vmem:[%s1 + $0x188] sm:$0xff]
  %v91 = vld [vmem:[%s1 + $0x190] sm:$0xff]
  %v92 = vld [vmem:[%s1 + $0x198] sm:$0xff]
  %v93 = vld [vmem:[%s1 + $0x1a0] sm:$0xff]
  %v94 = vld [vmem:[%s1 + $0x1a8] sm:$0xff]
  %v95 = vld [vmem:[%s1 + $0x1b0] sm:$0xff]
  %v96 = vld [vmem:[%s1 + $0x1b8] sm:$0xff]
  %v97 = vld [vmem:[%s1 + $0x1c0] sm:$0xff]
  %v98 = vld [vmem:[%s1 + $0x1c8] sm:$0xff]
  %v99 = vld [vmem:[%s1 + $0x1d0] sm:$0xff]
  %v100 = vld [vmem:[%s1 + $0x1d8] sm:$0xff]
  %v101 = vld [vmem:[%s1 + $0x1e0] sm:$0xff]
  %v102 = vld [vmem:[%s1 + $0x1e8] sm:$0xff]
  %v103 = vld [vmem:[%s1 + $0x1f0] sm:$0xff]
  %v104 = vld [vmem:[%s1 + $0x1f8] sm:$0xff]
  %v105 = vld [vmem:[%s1 + $0x200] sm:$0xff]
  %v106 = vld [vmem:[%s1 + $0x208] sm:$0xff]
  %v107 = vld [vmem:[%s1 + $0x210] sm:$0xff]
  %v108 = vld [vmem:[%s1 + $0x218] sm:$0xff]
  %v109 = vld [vmem:[%s1 + $0x220] sm:$0xff]
  %v110 = vld [vmem:[%s1 + $0x228] sm:$0xff]
  %v111 = vld [vmem:[%s1 + $0x230] sm:$0xff]
  %v112 = vld [vmem:[%s1 + $0x238] sm:$0xff]
  %v113 = vld [vmem:[%s1 + $0x240] sm:$0xff]
  %v114 = vld [vmem:[%s1 + $0x248] sm:$0xff]
  %v115 = vld [vmem:[%s1 + $0x250] sm:$0xff]
  %v116 = vld [vmem:[%s1 + $0x258] sm:$0xff]
  %v117 = vld [vmem:[%s1 + $0x260] sm:$0xff]
  %v118 = vld [vmem:[%s1 + $0x268] sm:$0xff]
  %v119 = vld [vmem:[%s1 + $0x270] sm:$0xff]
  %v120 = vld [vmem:[%s1 + $0x278] sm:$0xff]
  %v121 = vld [vmem:[%s1 + $0x280] sm:$0xff]
  %v122 = vld [vmem:[%s1 + $0x288] sm:$0xff]
  %v123 = vld [vmem:[%s1 + $0x290] sm:$0xff]
  %v124 = vld [vmem:[%s1 + $0x298] sm:$0xff]
  %v125 = vld [vmem:[%s1 + $0x2a0] sm:$0xff]
  %v126 = vld [vmem:[%s1 + $0x2a8] sm:$0xff]
  %v127 = vld [vmem:[%s1 + $0x2b0] sm:$0xff]
  %v128 = vld [vmem:[%s1 + $0x2b8] sm:$0xff]
  %v129 = vld [vmem:[%s1 + $0x2c0] sm:$0xff]
  %v130 = vld [vmem:[%s1 + $0x2c8] sm:$0xff]
  %v131 = vld [vmem:[%s1 + $0x2d0] sm:$0xff]
  %v132 = vld [vmem:[%s1 + $0x2d8] sm:$0xff]
  %v133 = vld [vmem:[%s1 + $0x2e0] sm:$0xff]
  %v134 = vld [vmem:[%s1 + $0x2e8] sm:$0xff]
  %v135 = vld [vmem:[%s1 + $0x2f0] sm:$0xff]
  %v136 = vld [vmem:[%s1 + $0x2f8] sm:$0xff]
  %v137 = vld [vmem:[%s1 + $0x300] sm:$0xff]
  %v138 = vld [vmem:[%s1 + $0x308] sm:$0xff]
  %v139 = vld [vmem:[%s2] sm:$0x3]
  %v141 = vlaneseq
  %v142 = vshrl.u32 %v141, 7
  %v143 = vsub.s32 0, %v142
  %v144 = vrot.slane %v139, %v143
  %v145 = vlaneseq
  %v146 = vshrl.u32 %v145, 7
  %v147 = vsub.s32 1, %v146
  %v148 = vrot.slane %v139, %v147
  %v249 = vunpack.c.l.b16 %v41
  %v250 = vunpack.c.h.b16 %v41
  %v251 = vunpack.c.l.b16 %v42
  %v252 = vunpack.c.h.b16 %v42
  %v253 = vunpack.c.l.b16 %v43
  %v254 = vunpack.c.h.b16 %v43
  %v255 = vunpack.c.l.b16 %v44
  %v256 = vunpack.c.h.b16 %v44
  %v257 = vunpack.c.l.b16 %v45
  %v258 = vunpack.c.h.b16 %v45
  %v259 = vunpack.c.l.b16 %v46
  %v260 = vunpack.c.h.b16 %v46
  %v261 = vunpack.c.l.b16 %v47
  %v262 = vunpack.c.h.b16 %v47
  %v263 = vunpack.c.l.b16 %v48
  %v264 = vunpack.c.h.b16 %v48
  %v265 = vunpack.c.l.b16 %v49
  %v266 = vunpack.c.h.b16 %v49
  %v267 = vunpack.c.l.b16 %v50
  %v268 = vunpack.c.h.b16 %v50
  %v269 = vunpack.c.l.b16 %v51
  %v270 = vunpack.c.h.b16 %v51
  %v271 = vunpack.c.l.b16 %v52
  %v272 = vunpack.c.h.b16 %v52
  %v273 = vunpack.c.l.b16 %v53
  %v274 = vunpack.c.h.b16 %v53
  %v275 = vunpack.c.l.b16 %v54
  %v276 = vunpack.c.h.b16 %v54
  %v277 = vunpack.c.l.b16 %v55
  %v278 = vunpack.c.h.b16 %v55
  %v279 = vunpack.c.l.b16 %v56
  %v280 = vunpack.c.h.b16 %v56
  %v281 = vunpack.c.l.b16 %v57
  %v282 = vunpack.c.h.b16 %v57
  %v283 = vunpack.c.l.b16 %v58
  %v284 = vunpack.c.h.b16 %v58
  %v285 = vunpack.c.l.b16 %v59
  %v286 = vunpack.c.h.b16 %v59
  %v287 = vunpack.c.l.b16 %v60
  %v288 = vunpack.c.h.b16 %v60
  %v289 = vunpack.c.l.b16 %v61
  %v290 = vunpack.c.h.b16 %v61
  %v291 = vunpack.c.l.b16 %v62
  %v292 = vunpack.c.h.b16 %v62
  %v293 = vunpack.c.l.b16 %v63
  %v294 = vunpack.c.h.b16 %v63
  %v295 = vunpack.c.l.b16 %v64
  %v296 = vunpack.c.h.b16 %v64
  %v297 = vunpack.c.l.b16 %v65
  %v298 = vunpack.c.h.b16 %v65
  %v299 = vunpack.c.l.b16 %v66
  %v300 = vunpack.c.h.b16 %v66
  %v301 = vunpack.c.l.b16 %v67
  %v302 = vunpack.c.h.b16 %v67
  %v303 = vunpack.c.l.b16 %v68
  %v304 = vunpack.c.h.b16 %v68
  %v305 = vunpack.c.l.b16 %v69
  %v306 = vunpack.c.h.b16 %v69
  %v307 = vunpack.c.l.b16 %v70
  %v308 = vunpack.c.h.b16 %v70
  %v309 = vunpack.c.l.b16 %v71
  %v310 = vunpack.c.h.b16 %v71
  %v311 = vunpack.c.l.b16 %v72
  %v312 = vunpack.c.h.b16 %v72
  %v313 = vunpack.c.l.b16 %v73
  %v314 = vunpack.c.h.b16 %v73
  %v315 = vunpack.c.l.b16 %v74
  %v316 = vunpack.c.h.b16 %v74
  %v317 = vunpack.c.l.b16 %v75
  %v318 = vunpack.c.h.b16 %v75
  %v319 = vunpack.c.l.b16 %v76
  %v320 = vunpack.c.h.b16 %v76
  %v321 = vunpack.c.l.b16 %v77
  %v322 = vunpack.c.h.b16 %v77
  %v323 = vunpack.c.l.b16 %v78
  %v324 = vunpack.c.h.b16 %v78
  %v325 = vunpack.c.l.b16 %v79
  %v326 = vunpack.c.h.b16 %v79
  %v327 = vunpack.c.l.b16 %v80
  %v328 = vunpack.c.h.b16 %v80
  %v329 = vunpack.c.l.b16 %v81
  %v330 = vunpack.c.h.b16 %v81
  %v331 = vunpack.c.l.b16 %v82
  %v332 = vunpack.c.h.b16 %v82
  %v333 = vunpack.c.l.b16 %v83
  %v334 = vunpack.c.h.b16 %v83
  %v335 = vunpack.c.l.b16 %v84
  %v336 = vunpack.c.h.b16 %v84
  %v337 = vunpack.c.l.b16 %v85
  %v338 = vunpack.c.h.b16 %v85
  %v339 = vunpack.c.l.b16 %v86
  %v340 = vunpack.c.h.b16 %v86
  %v341 = vunpack.c.l.b16 %v87
  %v342 = vunpack.c.h.b16 %v87
  %v343 = vunpack.c.l.b16 %v88
  %v344 = vunpack.c.h.b16 %v88
  %v345 = vunpack.c.l.b16 %v89
  %v346 = vunpack.c.h.b16 %v89
  %v347 = vunpack.c.l.b16 %v90
  %v348 = vunpack.c.h.b16 %v90
  %v349 = vunpack.c.l.b16 %v91
  %v350 = vunpack.c.h.b16 %v91
  %v351 = vunpack.c.l.b16 %v92
  %v352 = vunpack.c.h.b16 %v92
  %v353 = vunpack.c.l.b16 %v93
  %v354 = vunpack.c.h.b16 %v93
  %v355 = vunpack.c.l.b16 %v94
  %v356 = vunpack.c.h.b16 %v94
  %v357 = vunpack.c.l.b16 %v95
  %v358 = vunpack.c.h.b16 %v95
  %v359 = vunpack.c.l.b16 %v96
  %v360 = vunpack.c.h.b16 %v96
  %v361 = vunpack.c.l.b16 %v97
  %v362 = vunpack.c.h.b16 %v97
  %v363 = vunpack.c.l.b16 %v98
  %v364 = vunpack.c.h.b16 %v98
  %v365 = vunpack.c.l.b16 %v99
  %v366 = vunpack.c.h.b16 %v99
  %v367 = vunpack.c.l.b16 %v100
  %v368 = vunpack.c.h.b16 %v100
  %v369 = vunpack.c.l.b16 %v101
  %v370 = vunpack.c.h.b16 %v101
  %v371 = vunpack.c.l.b16 %v102
  %v372 = vunpack.c.h.b16 %v102
  %v373 = vunpack.c.l.b16 %v103
  %v374 = vunpack.c.h.b16 %v103
  %v375 = vunpack.c.l.b16 %v104
  %v376 = vunpack.c.h.b16 %v104
  %v377 = vunpack.c.l.b16 %v105
  %v378 = vunpack.c.h.b16 %v105
  %v379 = vunpack.c.l.b16 %v106
  %v380 = vunpack.c.h.b16 %v106
  %v381 = vunpack.c.l.b16 %v107
  %v382 = vunpack.c.h.b16 %v107
  %v383 = vunpack.c.l.b16 %v108
  %v384 = vunpack.c.h.b16 %v108
  %v385 = vunpack.c.l.b16 %v109
  %v386 = vunpack.c.h.b16 %v109
  %v387 = vunpack.c.l.b16 %v110
  %v388 = vunpack.c.h.b16 %v110
  %v389 = vunpack.c.l.b16 %v111
  %v390 = vunpack.c.h.b16 %v111
  %v391 = vunpack.c.l.b16 %v112
  %v392 = vunpack.c.h.b16 %v112
  %v393 = vunpack.c.l.b16 %v113
  %v394 = vunpack.c.h.b16 %v113
  %v395 = vunpack.c.l.b16 %v114
  %v396 = vunpack.c.h.b16 %v114
  %v397 = vunpack.c.l.b16 %v115
  %v398 = vunpack.c.h.b16 %v115
  %v399 = vunpack.c.l.b16 %v116
  %v400 = vunpack.c.h.b16 %v116
  %v401 = vunpack.c.l.b16 %v117
  %v402 = vunpack.c.h.b16 %v117
  %v403 = vunpack.c.l.b16 %v118
  %v404 = vunpack.c.h.b16 %v118
  %v405 = vunpack.c.l.b16 %v119
  %v406 = vunpack.c.h.b16 %v119
  %v407 = vunpack.c.l.b16 %v120
  %v408 = vunpack.c.h.b16 %v120
  %v409 = vunpack.c.l.b16 %v121
  %v410 = vunpack.c.h.b16 %v121
  %v411 = vunpack.c.l.b16 %v122
  %v412 = vunpack.c.h.b16 %v122
  %v413 = vunpack.c.l.b16 %v123
  %v414 = vunpack.c.h.b16 %v123
  %v415 = vunpack.c.l.b16 %v124
  %v416 = vunpack.c.h.b16 %v124
  %v417 = vunpack.c.l.b16 %v125
  %v418 = vunpack.c.h.b16 %v125
  %v419 = vunpack.c.l.b16 %v126
  %v420 = vunpack.c.h.b16 %v126
  %v421 = vunpack.c.l.b16 %v127
  %v422 = vunpack.c.h.b16 %v127
  %v423 = vunpack.c.l.b16 %v128
  %v424 = vunpack.c.h.b16 %v128
  %v425 = vunpack.c.l.b16 %v129
  %v426 = vunpack.c.h.b16 %v129
  %v427 = vunpack.c.l.b16 %v130
  %v428 = vunpack.c.h.b16 %v130
  %v429 = vunpack.c.l.b16 %v131
  %v430 = vunpack.c.h.b16 %v131
  %v431 = vunpack.c.l.b16 %v132
  %v432 = vunpack.c.h.b16 %v132
  %v433 = vunpack.c.l.b16 %v133
  %v434 = vunpack.c.h.b16 %v133
  %v435 = vunpack.c.l.b16 %v134
  %v436 = vunpack.c.h.b16 %v134
  %v437 = vunpack.c.l.b16 %v135
  %v438 = vunpack.c.h.b16 %v135
  %v439 = vunpack.c.l.b16 %v136
  %v440 = vunpack.c.h.b16 %v136
  %v441 = vunpack.c.l.b16 %v137
  %v442 = vunpack.c.h.b16 %v137
  %v443 = vunpack.c.l.b16 %v138
  %v444 = vunpack.c.h.b16 %v138
  %v445 = vpack.c.b16 %v251, %v249
  %v446 = vpack.c.b16 %v252, %v250
  %v447 = vpack.c.b16 %v255, %v253
  %v448 = vpack.c.b16 %v256, %v254
  %v449 = vpack.c.b16 %v259, %v257
  %v450 = vpack.c.b16 %v260, %v258
  %v451 = vpack.c.b16 %v263, %v261
  %v452 = vpack.c.b16 %v264, %v262
  %v453 = vpack.c.b16 %v267, %v265
  %v454 = vpack.c.b16 %v268, %v266
  %v455 = vpack.c.b16 %v271, %v269
  %v456 = vpack.c.b16 %v272, %v270
  %v457 = vpack.c.b16 %v275, %v273
  %v458 = vpack.c.b16 %v276, %v274
  %v459 = vpack.c.b16 %v279, %v277
  %v460 = vpack.c.b16 %v280, %v278
  %v461 = vpack.c.b16 %v283, %v281
  %v462 = vpack.c.b16 %v284, %v282
  %v463 = vpack.c.b16 %v287, %v285
  %v464 = vpack.c.b16 %v288, %v286
  %v465 = vpack.c.b16 %v291, %v289
  %v466 = vpack.c.b16 %v292, %v290
  %v467 = vpack.c.b16 %v295, %v293
  %v468 = vpack.c.b16 %v296, %v294
  %v469 = vpack.c.b16 %v299, %v297
  %v470 = vpack.c.b16 %v300, %v298
  %v471 = vpack.c.b16 %v303, %v301
  %v472 = vpack.c.b16 %v304, %v302
  %v473 = vpack.c.b16 %v307, %v305
  %v474 = vpack.c.b16 %v308, %v306
  %v475 = vpack.c.b16 %v311, %v309
  %v476 = vpack.c.b16 %v312, %v310
  %v477 = vpack.c.b16 %v315, %v313
  %v478 = vpack.c.b16 %v316, %v314
  %v479 = vpack.c.b16 %v319, %v317
  %v480 = vpack.c.b16 %v320, %v318
  %v481 = vpack.c.b16 %v323, %v321
  %v482 = vpack.c.b16 %v324, %v322
  %v483 = vpack.c.b16 %v327, %v325
  %v484 = vpack.c.b16 %v328, %v326
  %v485 = vpack.c.b16 %v331, %v329
  %v486 = vpack.c.b16 %v332, %v330
  %v487 = vpack.c.b16 %v335, %v333
  %v488 = vpack.c.b16 %v336, %v334
  %v489 = vpack.c.b16 %v339, %v337
  %v490 = vpack.c.b16 %v340, %v338
  %v491 = vpack.c.b16 %v343, %v341
  %v492 = vpack.c.b16 %v344, %v342
  %v493 = vpack.c.b16 %v347, %v345
  %v494 = vpack.c.b16 %v348, %v346
  %v495 = vpack.c.b16 %v351, %v349
  %v496 = vpack.c.b16 %v352, %v350
  %v497 = vpack.c.b16 %v355, %v353
  %v498 = vpack.c.b16 %v356, %v354
  %v499 = vpack.c.b16 %v359, %v357
  %v500 = vpack.c.b16 %v360, %v358
  %v501 = vpack.c.b16 %v363, %v361
  %v502 = vpack.c.b16 %v364, %v362
  %v503 = vpack.c.b16 %v367, %v365
  %v504 = vpack.c.b16 %v368, %v366
  %v505 = vpack.c.b16 %v371, %v369
  %v506 = vpack.c.b16 %v372, %v370
  %v507 = vpack.c.b16 %v375, %v373
  %v508 = vpack.c.b16 %v376, %v374
  %v509 = vpack.c.b16 %v379, %v377
  %v510 = vpack.c.b16 %v380, %v378
  %v511 = vpack.c.b16 %v383, %v381
  %v512 = vpack.c.b16 %v384, %v382
  %v513 = vpack.c.b16 %v387, %v385
  %v514 = vpack.c.b16 %v388, %v386
  %v515 = vpack.c.b16 %v391, %v389
  %v516 = vpack.c.b16 %v392, %v390
  %v517 = vpack.c.b16 %v395, %v393
  %v518 = vpack.c.b16 %v396, %v394
  %v519 = vpack.c.b16 %v399, %v397
  %v520 = vpack.c.b16 %v400, %v398
  %v521 = vpack.c.b16 %v403, %v401
  %v522 = vpack.c.b16 %v404, %v402
  %v523 = vpack.c.b16 %v407, %v405
  %v524 = vpack.c.b16 %v408, %v406
  %v525 = vpack.c.b16 %v411, %v409
  %v526 = vpack.c.b16 %v412, %v410
  %v527 = vpack.c.b16 %v415, %v413
  %v528 = vpack.c.b16 %v416, %v414
  %v529 = vpack.c.b16 %v419, %v417
  %v530 = vpack.c.b16 %v420, %v418
  %v531 = vpack.c.b16 %v423, %v421
  %v532 = vpack.c.b16 %v424, %v422
  %v533 = vpack.c.b16 %v427, %v425
  %v534 = vpack.c.b16 %v428, %v426
  %v535 = vpack.c.b16 %v431, %v429
  %v536 = vpack.c.b16 %v432, %v430
  %v537 = vpack.c.b16 %v435, %v433
  %v538 = vpack.c.b16 %v436, %v434
  %v539 = vpack.c.b16 %v439, %v437
  %v540 = vpack.c.b16 %v440, %v438
  %v541 = vpack.c.b16 %v443, %v441
  %v542 = vpack.c.b16 %v444, %v442
  %vm641 = vcmask 130048
  %v643 = vsel %vm641, %v40, 0
  %645 = vmatprep.subr.bf16.mxu0 %v460
  %646 = vmatpush1.bf16.msra.mxu0 %v459
  %647 = vmatprep.subr.bf16.mxu0 %v458
  %648 = vmatpush1.bf16.msra.mxu0 %v457
  %649 = vmatprep.subr.bf16.mxu0 %v456
  %650 = vmatpush1.bf16.msra.mxu0 %v455
  %651 = vmatprep.subr.bf16.mxu0 %v454
  %652 = vmatpush1.bf16.msra.mxu0 %v453
  %653 = vmatprep.subr.bf16.mxu0 %v452
  %654 = vmatpush1.bf16.msra.mxu0 %v451
  %655 = vmatprep.subr.bf16.mxu0 %v450
  %656 = vmatpush1.bf16.msra.mxu0 %v449
  %657 = vmatprep.subr.bf16.mxu0 %v448
  %658 = vmatpush1.bf16.msra.mxu0 %v447
  %659 = vmatprep.subr.bf16.mxu0 %v446
  %660 = vmatpush1.bf16.msra.mxu0 %v445
  %661 = vmatprep.subr.bf16.mxu0 %v476
  %662 = vmatpush2.bf16.msra.mxu0 %v475
  %663 = vmatprep.subr.bf16.mxu0 %v474
  %664 = vmatpush2.bf16.msra.mxu0 %v473
  %665 = vmatprep.subr.bf16.mxu0 %v472
  %666 = vmatpush2.bf16.msra.mxu0 %v471
  %667 = vmatprep.subr.bf16.mxu0 %v470
  %668 = vmatpush2.bf16.msra.mxu0 %v469
  %669 = vmatprep.subr.bf16.mxu0 %v468
  %670 = vmatpush2.bf16.msra.mxu0 %v467
  %671 = vmatprep.subr.bf16.mxu0 %v466
  %672 = vmatpush2.bf16.msra.mxu0 %v465
  %673 = vmatprep.subr.bf16.mxu0 %v464
  %674 = vmatpush2.bf16.msra.mxu0 %v463
  %675 = vmatprep.subr.bf16.mxu0 %v462
  %676 = vmatpush2.bf16.msra.mxu0 %v461
  %677 = vmatprep.mubr.bf16.mxu0 %v35
  %678 = vmatmul.mubr.bf16.gmra.mxu0 %v34
  %v679 = vpop.f32.mrf.mxu0
  %v680 = vadd.f32 %v144, %v679
  %v681 = vpop.f32.mrf.mxu0
  %v682 = vadd.f32 %v148, %v681
  %v683 = vpop.f32.mrf.mxu0
  %v684 = vpop.f32.mrf.mxu0
  %685 = vdwg.mxu0
  %686 = vmatprep.subr.bf16.mxu0 %v492
  %687 = vmatpush1.bf16.msra.mxu0 %v491
  %688 = vmatprep.subr.bf16.mxu0 %v490
  %689 = vmatpush1.bf16.msra.mxu0 %v489
  %690 = vmatprep.subr.bf16.mxu0 %v488
  %691 = vmatpush1.bf16.msra.mxu0 %v487
  %692 = vmatprep.subr.bf16.mxu0 %v486
  %693 = vmatpush1.bf16.msra.mxu0 %v485
  %694 = vmatprep.subr.bf16.mxu0 %v484
  %695 = vmatpush1.bf16.msra.mxu0 %v483
  %696 = vmatprep.subr.bf16.mxu0 %v482
  %697 = vmatpush1.bf16.msra.mxu0 %v481
  %698 = vmatprep.subr.bf16.mxu0 %v480
  %699 = vmatpush1.bf16.msra.mxu0 %v479
  %700 = vmatprep.subr.bf16.mxu0 %v478
  %701 = vmatpush1.bf16.msra.mxu0 %v477
  %702 = vmatprep.subr.bf16.mxu0 %v508
  %703 = vmatpush2.bf16.msra.mxu0 %v507
  %704 = vmatprep.subr.bf16.mxu0 %v506
  %705 = vmatpush2.bf16.msra.mxu0 %v505
  %706 = vmatprep.subr.bf16.mxu0 %v504
  %707 = vmatpush2.bf16.msra.mxu0 %v503
  %708 = vmatprep.subr.bf16.mxu0 %v502
  %709 = vmatpush2.bf16.msra.mxu0 %v501
  %710 = vmatprep.subr.bf16.mxu0 %v500
  %711 = vmatpush2.bf16.msra.mxu0 %v499
  %712 = vmatprep.subr.bf16.mxu0 %v498
  %713 = vmatpush2.bf16.msra.mxu0 %v497
  %714 = vmatprep.subr.bf16.mxu0 %v496
  %715 = vmatpush2.bf16.msra.mxu0 %v495
  %716 = vmatprep.subr.bf16.mxu0 %v494
  %717 = vmatpush2.bf16.msra.mxu0 %v493
  %718 = vmatprep.mubr.bf16.mxu0 %v37
  %719 = vmatmul.mubr.bf16.gmra.mxu0 %v36
  %v720 = vpop.f32.mrf.mxu0
  %v721 = vadd.f32 %v680, %v720
  %v722 = vpop.f32.mrf.mxu0
  %v723 = vadd.f32 %v682, %v722
  %v724 = vpop.f32.mrf.mxu0
  %v725 = vpop.f32.mrf.mxu0
  %726 = vdwg.mxu0
  %727 = vmatprep.subr.bf16.mxu0 %v524
  %728 = vmatpush1.bf16.msra.mxu0 %v523
  %729 = vmatprep.subr.bf16.mxu0 %v522
  %730 = vmatpush1.bf16.msra.mxu0 %v521
  %731 = vmatprep.subr.bf16.mxu0 %v520
  %732 = vmatpush1.bf16.msra.mxu0 %v519
  %733 = vmatprep.subr.bf16.mxu0 %v518
  %734 = vmatpush1.bf16.msra.mxu0 %v517
  %735 = vmatprep.subr.bf16.mxu0 %v516
  %736 = vmatpush1.bf16.msra.mxu0 %v515
  %737 = vmatprep.subr.bf16.mxu0 %v514
  %738 = vmatpush1.bf16.msra.mxu0 %v513
  %739 = vmatprep.subr.bf16.mxu0 %v512
  %740 = vmatpush1.bf16.msra.mxu0 %v511
  %741 = vmatprep.subr.bf16.mxu0 %v510
  %742 = vmatpush1.bf16.msra.mxu0 %v509
  %743 = vmatprep.subr.bf16.mxu0 %v540
  %744 = vmatpush2.bf16.msra.mxu0 %v539
  %745 = vmatprep.subr.bf16.mxu0 %v538
  %746 = vmatpush2.bf16.msra.mxu0 %v537
  %747 = vmatprep.subr.bf16.mxu0 %v536
  %748 = vmatpush2.bf16.msra.mxu0 %v535
  %749 = vmatprep.subr.bf16.mxu0 %v534
  %750 = vmatpush2.bf16.msra.mxu0 %v533
  %751 = vmatprep.subr.bf16.mxu0 %v532
  %752 = vmatpush2.bf16.msra.mxu0 %v531
  %753 = vmatprep.subr.bf16.mxu0 %v530
  %754 = vmatpush2.bf16.msra.mxu0 %v529
  %755 = vmatprep.subr.bf16.mxu0 %v528
  %756 = vmatpush2.bf16.msra.mxu0 %v527
  %757 = vmatprep.subr.bf16.mxu0 %v526
  %758 = vmatpush2.bf16.msra.mxu0 %v525
  %759 = vmatprep.mubr.bf16.mxu0 %v39
  %760 = vmatmul.mubr.bf16.gmra.mxu0 %v38
  %v761 = vpop.f32.mrf.mxu0
  %v762 = vadd.f32 %v721, %v761
  %v763 = vpop.f32.mrf.mxu0
  %v764 = vadd.f32 %v723, %v763
  %v765 = vpop.f32.mrf.mxu0
  %v766 = vpop.f32.mrf.mxu0
  %767 = vdwg.mxu0
  %768 = vmatprep.subr.bf16.mxu0 0
  %769 = vmatpush1.bf16.msra.mxu0 0
  %770 = vmatprep.subr.bf16.mxu0 0
  %771 = vmatpush1.bf16.msra.mxu0 0
  %772 = vmatprep.subr.bf16.mxu0 0
  %773 = vmatpush1.bf16.msra.mxu0 0
  %774 = vmatprep.subr.bf16.mxu0 0
  %775 = vmatpush1.bf16.msra.mxu0 0
  %776 = vmatprep.subr.bf16.mxu0 0
  %777 = vmatpush1.bf16.msra.mxu0 0
  %778 = vmatprep.subr.bf16.mxu0 0
  %779 = vmatpush1.bf16.msra.mxu0 0
  %780 = vmatprep.subr.bf16.mxu0 0
  %781 = vmatpush1.bf16.msra.mxu0 0
  %782 = vmatprep.subr.bf16.mxu0 %v542
  %783 = vmatpush1.bf16.msra.mxu0 %v541
  %784 = vmatprep.subr.bf16.mxu0 0
  %785 = vmatpush2.bf16.msra.mxu0 0
  %786 = vmatprep.subr.bf16.mxu0 0
  %787 = vmatpush2.bf16.msra.mxu0 0
  %788 = vmatprep.subr.bf16.mxu0 0
  %789 = vmatpush2.bf16.msra.mxu0 0
  %790 = vmatprep.subr.bf16.mxu0 0
  %791 = vmatpush2.bf16.msra.mxu0 0
  %792 = vmatprep.subr.bf16.mxu0 0
  %793 = vmatpush2.bf16.msra.mxu0 0
  %794 = vmatprep.subr.bf16.mxu0 0
  %795 = vmatpush2.bf16.msra.mxu0 0
  %796 = vmatprep.subr.bf16.mxu0 0
  %797 = vmatpush2.bf16.msra.mxu0 0
  %798 = vmatprep.subr.bf16.mxu0 0
  %799 = vmatpush2.bf16.msra.mxu0 0
  %800 = vmatprep.mubr.bf16.mxu0 0
  %801 = vmatmul.mubr.bf16.gmra.mxu0 %v643
  %v802 = vpop.f32.mrf.mxu0
  %v803 = vadd.f32 %v762, %v802
  %v804 = vpop.f32.mrf.mxu0
  %v805 = vadd.f32 %v764, %v804
  %v806 = vpop.f32.mrf.mxu0
  %v807 = vpop.f32.mrf.mxu0
  %808 = vdwg.mxu0
  %v809 = vmax.f32 %v803, 0.0
  %v810 = vmax.f32 %v805, 0.0
  %v811 = vpack.c.bf16 %v809, %v809
  %v812 = vpack.c.bf16 %v810, %v810
  %v813 = vld [vmem:[%s3] sm:$0xff]
  %v814 = vld [vmem:[%s3 + $0x8] sm:$0xff]
  %v815 = vld [vmem:[%s3 + $0x10] sm:$0xff]
  %v816 = vld [vmem:[%s3 + $0x18] sm:$0xff]
  %v817 = vld [vmem:[%s3 + $0x20] sm:$0xff]
  %v818 = vld [vmem:[%s3 + $0x28] sm:$0xff]
  %v819 = vld [vmem:[%s3 + $0x30] sm:$0xff]
  %v820 = vld [vmem:[%s3 + $0x38] sm:$0xff]
  %v821 = vld [vmem:[%s3 + $0x40] sm:$0xff]
  %v822 = vld [vmem:[%s3 + $0x48] sm:$0xff]
  %v823 = vld [vmem:[%s3 + $0x50] sm:$0xff]
  %v824 = vld [vmem:[%s3 + $0x58] sm:$0xff]
  %v825 = vld [vmem:[%s3 + $0x60] sm:$0xff]
  %v826 = vld [vmem:[%s3 + $0x68] sm:$0xff]
  %v827 = vld [vmem:[%s3 + $0x70] sm:$0xff]
  %v828 = vld [vmem:[%s3 + $0x78] sm:$0xff]
  %v829 = vld [vmem:[%s3 + $0x80] sm:$0xff]
  %v830 = vld [vmem:[%s3 + $0x88] sm:$0xff]
  %v831 = vld [vmem:[%s3 + $0x90] sm:$0xff]
  %v832 = vld [vmem:[%s3 + $0x98] sm:$0xff]
  %v833 = vld [vmem:[%s3 + $0xa0] sm:$0xff]
  %v834 = vld [vmem:[%s3 + $0xa8] sm:$0xff]
  %v835 = vld [vmem:[%s3 + $0xb0] sm:$0xff]
  %v836 = vld [vmem:[%s3 + $0xb8] sm:$0xff]
  %v837 = vld [vmem:[%s3 + $0xc0] sm:$0xff]
  %v838 = vld [vmem:[%s3 + $0xc8] sm:$0xff]
  %v839 = vld [vmem:[%s3 + $0xd0] sm:$0xff]
  %v840 = vld [vmem:[%s3 + $0xd8] sm:$0xff]
  %v841 = vld [vmem:[%s3 + $0xe0] sm:$0xff]
  %v842 = vld [vmem:[%s3 + $0xe8] sm:$0xff]
  %v843 = vld [vmem:[%s3 + $0xf0] sm:$0xff]
  %v844 = vld [vmem:[%s3 + $0xf8] sm:$0xff]
  %v845 = vld [vmem:[%s4] sm:$0x3]
  %v847 = vlaneseq
  %v848 = vshrl.u32 %v847, 7
  %v849 = vsub.s32 0, %v848
  %v850 = vrot.slane %v845, %v849
  %v851 = vlaneseq
  %v852 = vshrl.u32 %v851, 7
  %v853 = vsub.s32 1, %v852
  %v854 = vrot.slane %v845, %v853
  %v889 = vunpack.c.l.b16 %v813
  %v890 = vunpack.c.h.b16 %v813
  %v891 = vunpack.c.l.b16 %v814
  %v892 = vunpack.c.h.b16 %v814
  %v893 = vunpack.c.l.b16 %v815
  %v894 = vunpack.c.h.b16 %v815
  %v895 = vunpack.c.l.b16 %v816
  %v896 = vunpack.c.h.b16 %v816
  %v897 = vunpack.c.l.b16 %v817
  %v898 = vunpack.c.h.b16 %v817
  %v899 = vunpack.c.l.b16 %v818
  %v900 = vunpack.c.h.b16 %v818
  %v901 = vunpack.c.l.b16 %v819
  %v902 = vunpack.c.h.b16 %v819
  %v903 = vunpack.c.l.b16 %v820
  %v904 = vunpack.c.h.b16 %v820
  %v905 = vunpack.c.l.b16 %v821
  %v906 = vunpack.c.h.b16 %v821
  %v907 = vunpack.c.l.b16 %v822
  %v908 = vunpack.c.h.b16 %v822
  %v909 = vunpack.c.l.b16 %v823
  %v910 = vunpack.c.h.b16 %v823
  %v911 = vunpack.c.l.b16 %v824
  %v912 = vunpack.c.h.b16 %v824
  %v913 = vunpack.c.l.b16 %v825
  %v914 = vunpack.c.h.b16 %v825
  %v915 = vunpack.c.l.b16 %v826
  %v916 = vunpack.c.h.b16 %v826
  %v917 = vunpack.c.l.b16 %v827
  %v918 = vunpack.c.h.b16 %v827
  %v919 = vunpack.c.l.b16 %v828
  %v920 = vunpack.c.h.b16 %v828
  %v921 = vunpack.c.l.b16 %v829
  %v922 = vunpack.c.h.b16 %v829
  %v923 = vunpack.c.l.b16 %v830
  %v924 = vunpack.c.h.b16 %v830
  %v925 = vunpack.c.l.b16 %v831
  %v926 = vunpack.c.h.b16 %v831
  %v927 = vunpack.c.l.b16 %v832
  %v928 = vunpack.c.h.b16 %v832
  %v929 = vunpack.c.l.b16 %v833
  %v930 = vunpack.c.h.b16 %v833
  %v931 = vunpack.c.l.b16 %v834
  %v932 = vunpack.c.h.b16 %v834
  %v933 = vunpack.c.l.b16 %v835
  %v934 = vunpack.c.h.b16 %v835
  %v935 = vunpack.c.l.b16 %v836
  %v936 = vunpack.c.h.b16 %v836
  %v937 = vunpack.c.l.b16 %v837
  %v938 = vunpack.c.h.b16 %v837
  %v939 = vunpack.c.l.b16 %v838
  %v940 = vunpack.c.h.b16 %v838
  %v941 = vunpack.c.l.b16 %v839
  %v942 = vunpack.c.h.b16 %v839
  %v943 = vunpack.c.l.b16 %v840
  %v944 = vunpack.c.h.b16 %v840
  %v945 = vunpack.c.l.b16 %v841
  %v946 = vunpack.c.h.b16 %v841
  %v947 = vunpack.c.l.b16 %v842
  %v948 = vunpack.c.h.b16 %v842
  %v949 = vunpack.c.l.b16 %v843
  %v950 = vunpack.c.h.b16 %v843
  %v951 = vunpack.c.l.b16 %v844
  %v952 = vunpack.c.h.b16 %v844
  %v953 = vpack.c.b16 %v891, %v889
  %v954 = vpack.c.b16 %v892, %v890
  %v955 = vpack.c.b16 %v895, %v893
  %v956 = vpack.c.b16 %v896, %v894
  %v957 = vpack.c.b16 %v899, %v897
  %v958 = vpack.c.b16 %v900, %v898
  %v959 = vpack.c.b16 %v903, %v901
  %v960 = vpack.c.b16 %v904, %v902
  %v961 = vpack.c.b16 %v907, %v905
  %v962 = vpack.c.b16 %v908, %v906
  %v963 = vpack.c.b16 %v911, %v909
  %v964 = vpack.c.b16 %v912, %v910
  %v965 = vpack.c.b16 %v915, %v913
  %v966 = vpack.c.b16 %v916, %v914
  %v967 = vpack.c.b16 %v919, %v917
  %v968 = vpack.c.b16 %v920, %v918
  %v969 = vpack.c.b16 %v923, %v921
  %v970 = vpack.c.b16 %v924, %v922
  %v971 = vpack.c.b16 %v927, %v925
  %v972 = vpack.c.b16 %v928, %v926
  %v973 = vpack.c.b16 %v931, %v929
  %v974 = vpack.c.b16 %v932, %v930
  %v975 = vpack.c.b16 %v935, %v933
  %v976 = vpack.c.b16 %v936, %v934
  %v977 = vpack.c.b16 %v939, %v937
  %v978 = vpack.c.b16 %v940, %v938
  %v979 = vpack.c.b16 %v943, %v941
  %v980 = vpack.c.b16 %v944, %v942
  %v981 = vpack.c.b16 %v947, %v945
  %v982 = vpack.c.b16 %v948, %v946
  %v983 = vpack.c.b16 %v951, %v949
  %v984 = vpack.c.b16 %v952, %v950
  %1017 = vmatprep.subr.bf16.mxu0 %v968
  %1018 = vmatpush1.bf16.msra.mxu0 %v967
  %1019 = vmatprep.subr.bf16.mxu0 %v966
  %1020 = vmatpush1.bf16.msra.mxu0 %v965
  %1021 = vmatprep.subr.bf16.mxu0 %v964
  %1022 = vmatpush1.bf16.msra.mxu0 %v963
  %1023 = vmatprep.subr.bf16.mxu0 %v962
  %1024 = vmatpush1.bf16.msra.mxu0 %v961
  %1025 = vmatprep.subr.bf16.mxu0 %v960
  %1026 = vmatpush1.bf16.msra.mxu0 %v959
  %1027 = vmatprep.subr.bf16.mxu0 %v958
  %1028 = vmatpush1.bf16.msra.mxu0 %v957
  %1029 = vmatprep.subr.bf16.mxu0 %v956
  %1030 = vmatpush1.bf16.msra.mxu0 %v955
  %1031 = vmatprep.subr.bf16.mxu0 %v954
  %1032 = vmatpush1.bf16.msra.mxu0 %v953
  %1033 = vmatprep.subr.bf16.mxu0 %v984
  %1034 = vmatpush2.bf16.msra.mxu0 %v983
  %1035 = vmatprep.subr.bf16.mxu0 %v982
  %1036 = vmatpush2.bf16.msra.mxu0 %v981
  %1037 = vmatprep.subr.bf16.mxu0 %v980
  %1038 = vmatpush2.bf16.msra.mxu0 %v979
  %1039 = vmatprep.subr.bf16.mxu0 %v978
  %1040 = vmatpush2.bf16.msra.mxu0 %v977
  %1041 = vmatprep.subr.bf16.mxu0 %v976
  %1042 = vmatpush2.bf16.msra.mxu0 %v975
  %1043 = vmatprep.subr.bf16.mxu0 %v974
  %1044 = vmatpush2.bf16.msra.mxu0 %v973
  %1045 = vmatprep.subr.bf16.mxu0 %v972
  %1046 = vmatpush2.bf16.msra.mxu0 %v971
  %1047 = vmatprep.subr.bf16.mxu0 %v970
  %1048 = vmatpush2.bf16.msra.mxu0 %v969
  %1049 = vmatprep.mubr.bf16.mxu0 %v812
  %1050 = vmatmul.mubr.bf16.gmra.mxu0 %v811
  %v1051 = vpop.f32.mrf.mxu0
  %v1052 = vadd.f32 %v850, %v1051
  %v1053 = vpop.f32.mrf.mxu0
  %v1054 = vadd.f32 %v854, %v1053
  %v1055 = vpop.f32.mrf.mxu0
  %v1056 = vpop.f32.mrf.mxu0
  %1057 = vdwg.mxu0
  %v1058 = vmax.f32 %v1052, 0.0
  %v1059 = vmax.f32 %v1054, 0.0
  %v1060 = vpack.c.bf16 %v1058, %v1058
  %v1061 = vpack.c.bf16 %v1059, %v1059
  %v1062 = vld [vmem:[%s5] sm:$0xf]
  %v1063 = vld [vmem:[%s5 + $0x4] sm:$0xf]
  %v1064 = vld [vmem:[%s5 + $0x8] sm:$0xf]
  %v1065 = vld [vmem:[%s5 + $0xc] sm:$0xf]
  %v1066 = vld [vmem:[%s5 + $0x10] sm:$0xf]
  %v1067 = vld [vmem:[%s5 + $0x14] sm:$0xf]
  %v1068 = vld [vmem:[%s5 + $0x18] sm:$0xf]
  %v1069 = vld [vmem:[%s5 + $0x1c] sm:$0xf]
  %v1070 = vld [vmem:[%s5 + $0x20] sm:$0xf]
  %v1071 = vld [vmem:[%s5 + $0x24] sm:$0xf]
  %v1072 = vld [vmem:[%s5 + $0x28] sm:$0xf]
  %v1073 = vld [vmem:[%s5 + $0x2c] sm:$0xf]
  %v1074 = vld [vmem:[%s5 + $0x30] sm:$0xf]
  %v1075 = vld [vmem:[%s5 + $0x34] sm:$0xf]
  %v1076 = vld [vmem:[%s5 + $0x38] sm:$0xf]
  %v1077 = vld [vmem:[%s5 + $0x3c] sm:$0xf]
  %v1078 = vld [vmem:[%s5 + $0x40] sm:$0xf]
  %v1079 = vld [vmem:[%s5 + $0x44] sm:$0xf]
  %v1080 = vld [vmem:[%s5 + $0x48] sm:$0xf]
  %v1081 = vld [vmem:[%s5 + $0x4c] sm:$0xf]
  %v1082 = vld [vmem:[%s5 + $0x50] sm:$0xf]
  %v1083 = vld [vmem:[%s5 + $0x54] sm:$0xf]
  %v1084 = vld [vmem:[%s5 + $0x58] sm:$0xf]
  %v1085 = vld [vmem:[%s5 + $0x5c] sm:$0xf]
  %v1086 = vld [vmem:[%s5 + $0x60] sm:$0xf]
  %v1087 = vld [vmem:[%s5 + $0x64] sm:$0xf]
  %v1088 = vld [vmem:[%s5 + $0x68] sm:$0xf]
  %v1089 = vld [vmem:[%s5 + $0x6c] sm:$0xf]
  %v1090 = vld [vmem:[%s5 + $0x70] sm:$0xf]
  %v1091 = vld [vmem:[%s5 + $0x74] sm:$0xf]
  %v1092 = vld [vmem:[%s5 + $0x78] sm:$0xf]
  %v1093 = vld [vmem:[%s5 + $0x7c] sm:$0xf]
  %v1094 = vld [vmem:[%s6] sm:$0x1]
  %v1096 = vlaneseq
  %v1097 = vshrl.u32 %v1096, 7
  %v1098 = vsub.s32 0, %v1097
  %v1099 = vrot.slane %v1094, %v1098
  %v1133 = vunpack.c.l.b16 %v1062
  %v1134 = vunpack.c.l.b16 %v1063
  %v1135 = vunpack.c.l.b16 %v1064
  %v1136 = vunpack.c.l.b16 %v1065
  %v1137 = vunpack.c.l.b16 %v1066
  %v1138 = vunpack.c.l.b16 %v1067
  %v1139 = vunpack.c.l.b16 %v1068
  %v1140 = vunpack.c.l.b16 %v1069
  %v1141 = vunpack.c.l.b16 %v1070
  %v1142 = vunpack.c.l.b16 %v1071
  %v1143 = vunpack.c.l.b16 %v1072
  %v1144 = vunpack.c.l.b16 %v1073
  %v1145 = vunpack.c.l.b16 %v1074
  %v1146 = vunpack.c.l.b16 %v1075
  %v1147 = vunpack.c.l.b16 %v1076
  %v1148 = vunpack.c.l.b16 %v1077
  %v1149 = vunpack.c.l.b16 %v1078
  %v1150 = vunpack.c.l.b16 %v1079
  %v1151 = vunpack.c.l.b16 %v1080
  %v1152 = vunpack.c.l.b16 %v1081
  %v1153 = vunpack.c.l.b16 %v1082
  %v1154 = vunpack.c.l.b16 %v1083
  %v1155 = vunpack.c.l.b16 %v1084
  %v1156 = vunpack.c.l.b16 %v1085
  %v1157 = vunpack.c.l.b16 %v1086
  %v1158 = vunpack.c.l.b16 %v1087
  %v1159 = vunpack.c.l.b16 %v1088
  %v1160 = vunpack.c.l.b16 %v1089
  %v1161 = vunpack.c.l.b16 %v1090
  %v1162 = vunpack.c.l.b16 %v1091
  %v1163 = vunpack.c.l.b16 %v1092
  %v1164 = vunpack.c.l.b16 %v1093
  %v1165 = vpack.c.b16 %v1134, %v1133
  %v1166 = vpack.c.b16 %v1136, %v1135
  %v1167 = vpack.c.b16 %v1138, %v1137
  %v1168 = vpack.c.b16 %v1140, %v1139
  %v1169 = vpack.c.b16 %v1142, %v1141
  %v1170 = vpack.c.b16 %v1144, %v1143
  %v1171 = vpack.c.b16 %v1146, %v1145
  %v1172 = vpack.c.b16 %v1148, %v1147
  %v1173 = vpack.c.b16 %v1150, %v1149
  %v1174 = vpack.c.b16 %v1152, %v1151
  %v1175 = vpack.c.b16 %v1154, %v1153
  %v1176 = vpack.c.b16 %v1156, %v1155
  %v1177 = vpack.c.b16 %v1158, %v1157
  %v1178 = vpack.c.b16 %v1160, %v1159
  %v1179 = vpack.c.b16 %v1162, %v1161
  %v1180 = vpack.c.b16 %v1164, %v1163
  %1197 = vmatprep.subr.bf16.mxu0 0
  %1198 = vmatpush1.bf16.msra.mxu0 %v1172
  %1199 = vmatprep.subr.bf16.mxu0 0
  %1200 = vmatpush1.bf16.msra.mxu0 %v1171
  %1201 = vmatprep.subr.bf16.mxu0 0
  %1202 = vmatpush1.bf16.msra.mxu0 %v1170
  %1203 = vmatprep.subr.bf16.mxu0 0
  %1204 = vmatpush1.bf16.msra.mxu0 %v1169
  %1205 = vmatprep.subr.bf16.mxu0 0
  %1206 = vmatpush1.bf16.msra.mxu0 %v1168
  %1207 = vmatprep.subr.bf16.mxu0 0
  %1208 = vmatpush1.bf16.msra.mxu0 %v1167
  %1209 = vmatprep.subr.bf16.mxu0 0
  %1210 = vmatpush1.bf16.msra.mxu0 %v1166
  %1211 = vmatprep.subr.bf16.mxu0 0
  %1212 = vmatpush1.bf16.msra.mxu0 %v1165
  %1213 = vmatprep.subr.bf16.mxu0 0
  %1214 = vmatpush2.bf16.msra.mxu0 %v1180
  %1215 = vmatprep.subr.bf16.mxu0 0
  %1216 = vmatpush2.bf16.msra.mxu0 %v1179
  %1217 = vmatprep.subr.bf16.mxu0 0
  %1218 = vmatpush2.bf16.msra.mxu0 %v1178
  %1219 = vmatprep.subr.bf16.mxu0 0
  %1220 = vmatpush2.bf16.msra.mxu0 %v1177
  %1221 = vmatprep.subr.bf16.mxu0 0
  %1222 = vmatpush2.bf16.msra.mxu0 %v1176
  %1223 = vmatprep.subr.bf16.mxu0 0
  %1224 = vmatpush2.bf16.msra.mxu0 %v1175
  %1225 = vmatprep.subr.bf16.mxu0 0
  %1226 = vmatpush2.bf16.msra.mxu0 %v1174
  %1227 = vmatprep.subr.bf16.mxu0 0
  %1228 = vmatpush2.bf16.msra.mxu0 %v1173
  %1229 = vmatprep.mubr.bf16.mxu0 %v1061
  %1230 = vmatmul.mubr.bf16.gmra.mxu0 %v1060
  %v1231 = vpop.f32.mrf.mxu0
  %v1232 = vadd.f32 %v1099, %v1231
  %v1233 = vpop.f32.mrf.mxu0
  %v1234 = vpop.f32.mrf.mxu0
  %v1235 = vpop.f32.mrf.mxu0
  %1236 = vdwg.mxu0
  %1237 = vmax.xlane.f32.xlu0 %v1232
  %v1238 = vpop.xlane.xlu0 %1237
  %v1239 = vsub.f32 %v1232, %v1238
  %v1240 = vmul.f32 %v1239, 1.442695
  %v1241 = vpow.pop %v1240
  %1242 = vadd.xlane.f32.xlu0 %v1241
  %v1243 = vpop.xlane.xlu0 %1242
  %v1244 = vlog2.pop %v1243
  %v1245 = vmul.f32 %v1244, 0.6931472
  %v1246 = vsub.f32 %v1239, %v1245
  %v1247 = vpack.c.bf16 %v1246, %v1246
  %1248 = vst [vmem:[%s7] sm:$0xf] %v1247
  // Predicated region
  $region30: #{model_d_forward.1} parent=0 // pred_check
    _
  $region31: #{model_d_forward.1} parent=0 // pred_check_branch
    %1250 = sbr.rel (0) target = $region33
  $region32: #{model_d_forward.1} parent=0 // pred_region
    _
  $region33: #{model_d_forward.1} parent=0 // pred_fallthru
    _
  // Predicated region
  $region34: #{model_d_forward.1} parent=0 // pred_check
    _
  $region35: #{model_d_forward.1} parent=0 // pred_check_branch
    %1252 = sbr.rel (0) target = $region37
  $region36: #{model_d_forward.1} parent=0 // pred_region
    _
  $region37: #{model_d_forward.1} parent=0 // pred_fallthru
    _

</llo_original>
